<compile_context>
chip_gen: v5e
topology: v5e:2x2
jax: 0.10.0
libtpu: 0.0.40
codegen_flags: <defaults>
</compile_context>

<pallas_src>
import functools
from typing import NamedTuple

import numpy as np
import jax
import jax.numpy as jnp
from jax import lax
from jax.experimental import pallas as pl
from jax.experimental.pallas import tpu as pltpu


def _round_up(x: int, m: int) -> int:
    return ((x + m - 1) // m) * m


def _physical_vmem_bytes() -> int:
    """Best-effort physical VMEM capacity; conservative fallback."""
    try:
        info = pltpu.get_tpu_info()
        cap = int(getattr(info, "vmem_capacity_bytes", 0))
        if cap > 0:
            return cap
    except Exception:
        pass
    return 128 << 20  # v5e / v6e class


class HeadPlan(NamedTuple):
    B: int
    B_pad: int
    K: int
    K_pad: int
    N: int
    N_pad: int
    tn: int
    tk: int
    x_resident: bool
    vmem_limit_bytes: int
    compute_dtype: object


def plan_classification_head(B: int, K: int, N: int, *,
                             compute_dtype=jnp.bfloat16,
                             tn_max: int = 256) -> HeadPlan:
    """Static tiling plan (all Python ints; computed once)."""
    B_pad = _round_up(max(B, 1), 8)          # sublane-aligned batch
    N_pad = _round_up(max(N, 1), 128)        # lane-dense output

    # tn must divide N_pad exactly (no overshoot).  Prefer >= 2 N tiles when
    # N_pad >= 256 so the "parallel" grid axis can shard across 2 TCs (v7x);
    # the extra grid step (~0.35 us) is negligible on single-TC chips.
    tn_cap = min(tn_max, N_pad)
    if N_pad >= 256:
        tn_cap = min(tn_cap, N_pad // 2)
    tn_cap = max(128, (tn_cap // 128) * 128)
    tn = 128
    for t in range(128, tn_cap + 1, 128):
        if N_pad % t == 0:
            tn = t

    elem = int(np.dtype(compute_dtype).itemsize)

    phys = _physical_vmem_bytes()
    # Tile budget per generation: tight on 64-MiB-VMEM chips (v7x), roomy on
    # 128-MiB chips (v5e/v6e) so tk grows and the K grid collapses.
    budget = (20 << 20) if phys <= (64 << 20) else (48 << 20)

    K_ALIGN = 256
    K_min = _round_up(max(K, 1), K_ALIGN)

    # Fixed VMEM: double-buffered output block + bias block + slack.
    fixed = 2 * B_pad * tn * 4 + 2 * tn * 4 + (2 << 20)

    # Keep x resident (single VMEM block, DMA'd once) when it is small.
    x_res_bytes = 2 * B_pad * _round_up(K_min + K_ALIGN, K_ALIGN) * elem
    x_resident = x_res_bytes <= min(6 << 20, max(budget - fixed, 0) // 3)

    if x_resident:
        avail_w = budget - fixed - x_res_bytes
        per_col = 2 * tn * elem                    # double-buffered W columns
    else:
        avail_w = budget - fixed
        per_col = 2 * (tn + B_pad) * elem          # double-buffered W + x

    max_tk = max(K_ALIGN, (avail_w // per_col) // K_ALIGN * K_ALIGN)
    n_k = -(-K_min // max_tk)                      # number of K tiles
    tk = _round_up(-(-K_min // n_k), K_ALIGN)      # balanced tile size
    K_pad = n_k * tk

    # Explicit scoped-VMEM limit sized from the actual tiles (v5e default is
    # only 16 MiB); never below 32 MiB, never above physical.
    x_vmem = 2 * B_pad * (K_pad if x_resident else tk) * elem
    used = 2 * tk * tn * elem + x_vmem + 2 * B_pad * tn * 4 + 2 * tn * 4
    vmem_limit = int(min(phys, max(used + (4 << 20), 32 << 20)))

    return HeadPlan(B, B_pad, K, K_pad, N, N_pad, tn, tk, x_resident,
                    vmem_limit, compute_dtype)


def _make_linear_kernel(tk: int, x_resident: bool):
    def kernel(x_ref, w_ref, b_ref, o_ref):
        # Grid: (n_tiles, k_tiles); k is the innermost "arbitrary" axis and the
        # output index map is k-independent, so o_ref stays resident in VMEM
        # and we accumulate straight into it (f32).  Bias folded in at k == 0.
        k = pl.program_id(1)

        @pl.when(k == 0)
        def _():
            o_ref[...] = jnp.broadcast_to(b_ref[...], o_ref.shape)

        if x_resident:
            # x is one resident (B_pad, K_pad) block; slice the K tile here.
            start = pl.multiple_of(k * tk, 256)
            x_blk = x_ref[:, pl.ds(start, tk)]
        else:
            x_blk = x_ref[...]

        # Plain NN matmul on the MXU: (B_pad, tk) @ (tk, tn) -> (B_pad, tn),
        # bf16 inputs, f32 accumulation.
        o_ref[...] += jnp.dot(x_blk, w_ref[...],
                              preferred_element_type=jnp.float32)

    return kernel


def prepare_classification_head(weight, bias, batch_size: int, *,
                                compute_dtype=jnp.bfloat16, tn_max: int = 256):
    """One-time parameter prep (NOT in the per-call hot path):
    transpose W to (K, N), pad to (K_pad, N_pad), cast to compute dtype."""
    N, K = weight.shape
    plan = plan_classification_head(batch_size, K, N,
                                    compute_dtype=compute_dtype, tn_max=tn_max)

    w_kn = weight.T                                   # (K, N)
    if plan.K_pad - K or plan.N_pad - N:
        w_kn = jnp.pad(w_kn, ((0, plan.K_pad - K), (0, plan.N_pad - N)))
    w_prep = w_kn.astype(compute_dtype)

    b_prep = bias
    if plan.N_pad - N:
        b_prep = jnp.pad(b_prep, (0, plan.N_pad - N))
    b_prep = b_prep.reshape(1, plan.N_pad).astype(jnp.float32)

    return w_prep, b_prep, plan


def classification_head_forward(x_nchw, w_prep, b_prep, plan: HeadPlan):
    """y = flatten(x) @ W.T + b  using the prepared (K_pad, N_pad) weight."""
    B = x_nchw.shape[0]
    x_flat = x_nchw.reshape(B, -1)
    K = x_flat.shape[1]
    assert K == plan.K and B == plan.B, "input shape does not match the plan"

    pad_b, pad_k = plan.B_pad - B, plan.K_pad - K
    if pad_b or pad_k:
        x_flat = jnp.pad(x_flat, ((0, pad_b), (0, pad_k)))
    x_p = x_flat.astype(plan.compute_dtype)

    if plan.x_resident:
        x_spec = pl.BlockSpec((plan.B_pad, plan.K_pad), lambda n, k: (0, 0))
    else:
        # Streamed x (only for very large B*K); note it is re-DMA'd per N tile.
        x_spec = pl.BlockSpec((plan.B_pad, plan.tk), lambda n, k: (0, k))

    grid = (plan.N_pad // plan.tn, plan.K_pad // plan.tk)

    out_padded = pl.pallas_call(
        _make_linear_kernel(plan.tk, plan.x_resident),
        out_shape=jax.ShapeDtypeStruct((plan.B_pad, plan.N_pad), jnp.float32),
        grid_spec=pltpu.PrefetchScalarGridSpec(
            num_scalar_prefetch=0,
            grid=grid,
            in_specs=[
                x_spec,
                pl.BlockSpec((plan.tk, plan.tn), lambda n, k: (k, n)),  # W (K,N)
                pl.BlockSpec((1, plan.tn), lambda n, k: (0, n)),        # bias
            ],
            out_specs=pl.BlockSpec((plan.B_pad, plan.tn), lambda n, k: (0, n)),
        ),
        compiler_params=pltpu.CompilerParams(
            dimension_semantics=("parallel", "arbitrary"),
            vmem_limit_bytes=plan.vmem_limit_bytes,
        ),
    )(x_p, w_prep, b_prep)

    return out_padded[:B, :plan.N]


if __name__ == "__main__":
    # Small shapes consistent with the module: NCHW input flattened into Linear.
    B, C, H, W = 2, 4, 16, 16
    input_dim = C * H * W          # 1024
    target_dim = 8

    key = jax.random.PRNGKey(0)
    kx, kw, kb = jax.random.split(key, 3)

    x = jax.random.normal(kx, (B, C, H, W), dtype=jnp.float32)
    # PyTorch Linear parameter shapes: W (out, in), b (out,)
    weight = (jax.random.normal(kw, (target_dim, input_dim), dtype=jnp.float32)
              * (1.0 / jnp.sqrt(input_dim)))
    bias = jax.random.normal(kb, (target_dim,), dtype=jnp.float32) * 0.01

    # One-time parameter prep (transpose/pad/cast), then the hot-path forward.
    w_prep, b_prep, plan = prepare_classification_head(weight, bias, B)
    y = classification_head_forward(x, w_prep, b_prep, plan)
    y = jax.block_until_ready(y)

    assert y.shape == (B, target_dim)

    # Reference 1: identical bf16 input quantization, f32 accumulation.
    x_q = x.reshape(B, -1).astype(plan.compute_dtype).astype(jnp.float32)
    w_q = weight.astype(plan.compute_dtype).astype(jnp.float32)
    y_ref_q = jnp.dot(x_q, w_q.T, precision=lax.Precision.HIGHEST) + bias
    assert jnp.allclose(y, y_ref_q, atol=2e-3, rtol=2e-3), (
        float(jnp.max(jnp.abs(y - y_ref_q))))

    # Reference 2: full-f32 module semantics (loose tolerance for bf16 inputs).
    y_ref = jnp.dot(x.reshape(B, -1), weight.T,
                    precision=lax.Precision.HIGHEST) + bias
    assert jnp.allclose(y, y_ref, atol=3e-2, rtol=3e-2), (
        float(jnp.max(jnp.abs(y - y_ref))))

    print("KERNEL_OK")
</pallas_src>

<mosaic_0001>
module attributes {stable_mosaic.version = 11 : i64} {
  func.func @kernel(%arg0: i32, %arg1: i32, %arg2: memref<8x1024xbf16, #tpu.memory_space<vmem>>, %arg3: memref<1024x128xbf16, #tpu.memory_space<vmem>>, %arg4: memref<1x128xf32, #tpu.memory_space<vmem>>, %arg5: memref<8x128xf32, #tpu.memory_space<vmem>>) attributes {dimension_semantics = [#tpu.dimension_semantics<parallel>, #tpu.dimension_semantics<arbitrary>], iteration_bounds = array<i64: 1, 1>, scalar_prefetch = 0 : i64, scratch_operands = 0 : i64, tpu.core_type = #tpu.core_type<tc>, window_params = [{pipeline_mode = #tpu.pipeline_mode<synchronous>, transform_indices = @transform_0, window_bounds = array<i64: 8, 1024>}, {transform_indices = @transform_1, window_bounds = array<i64: 1024, 128>}, {transform_indices = @transform_2, window_bounds = array<i64: 1, 128>}, {transform_indices = @transform_3, window_bounds = array<i64: 8, 128>}]} {
    %c0_i32 = arith.constant 0 : i32
    %0 = arith.cmpi eq, %arg1, %c0_i32 : i32
    %1 = arith.extui %0 : i1 to i32
    %c0_i32_0 = arith.constant 0 : i32
    %2 = arith.cmpi ne, %1, %c0_i32_0 : i32
    scf.if %2 {
      %c0_7 = arith.constant 0 : index
      %c0_8 = arith.constant 0 : index
      %12 = vector.load %arg4[%c0_7, %c0_8] : memref<1x128xf32, #tpu.memory_space<vmem>>, vector<1x128xf32>
      %13 = vector.shape_cast %12 : vector<1x128xf32> to vector<1x128xf32>
      %14 = vector.broadcast %13 : vector<1x128xf32> to vector<8x128xf32>
      %c0_9 = arith.constant 0 : index
      %c0_10 = arith.constant 0 : index
      %15 = vector.load %arg5[%c0_9, %c0_10] : memref<8x128xf32, #tpu.memory_space<vmem>>, vector<8x128xf32>
      tpu.vector_store %arg5[%c0_9, %c0_10], %14 {strides = array<i32>} : memref<8x128xf32, #tpu.memory_space<vmem>>, vector<8x128xf32>,
    } else {
    }
    %c1024_i32 = arith.constant 1024 : i32
    %3 = arith.muli %arg1, %c1024_i32 : i32
    %4 = tpu.assume_multiple %3, 256 : i32
    %c0 = arith.constant 0 : index
    %5 = arith.index_cast %4 : i32 to index
    %6 = vector.load %arg2[%c0, %5] : memref<8x1024xbf16, #tpu.memory_space<vmem>>, vector<8x1024xbf16>
    %c0_1 = arith.constant 0 : index
    %c0_2 = arith.constant 0 : index
    %7 = vector.load %arg5[%c0_1, %c0_2] : memref<8x128xf32, #tpu.memory_space<vmem>>, vector<8x128xf32>
    %c0_3 = arith.constant 0 : index
    %c0_4 = arith.constant 0 : index
    %8 = vector.load %arg3[%c0_3, %c0_4] : memref<1024x128xbf16, #tpu.memory_space<vmem>>, vector<1024x128xbf16>
    %cst = arith.constant dense<0.000000e+00> : vector<8x128xf32>
    %9 = tpu.matmul %6, %8, %cst {dimension_numbers = #tpu.dot_dimension_numbers<[1], [0], [0], [1], [0, 0, 1, 1], [], []>} : vector<8x1024xbf16>, vector<1024x128xbf16>, vector<8x128xf32> -> vector<8x128xf32>
    %10 = arith.addf %7, %9 : vector<8x128xf32>
    %c0_5 = arith.constant 0 : index
    %c0_6 = arith.constant 0 : index
    %11 = vector.load %arg5[%c0_5, %c0_6] : memref<8x128xf32, #tpu.memory_space<vmem>>, vector<8x128xf32>
    tpu.vector_store %arg5[%c0_5, %c0_6], %10 {strides = array<i32>} : memref<8x128xf32, #tpu.memory_space<vmem>>, vector<8x128xf32>,
    return
  }
  func.func @transform_0(%arg0: i32, %arg1: i32) -> (i32, i32) {
    %c0_i32 = arith.constant 0 : i32
    %c0_i32_0 = arith.constant 0 : i32
    %c0_i32_1 = arith.constant 0 : i32
    return %c0_i32, %c0_i32_0 : i32, i32
  }
  func.func @transform_1(%arg0: i32, %arg1: i32) -> (i32, i32) {
    %c0_i32 = arith.constant 0 : i32
    return %arg1, %arg0 : i32, i32
  }
  func.func @transform_2(%arg0: i32, %arg1: i32) -> (i32, i32) {
    %c0_i32 = arith.constant 0 : i32
    %c0_i32_0 = arith.constant 0 : i32
    return %c0_i32, %arg0 : i32, i32
  }
  func.func @transform_3(%arg0: i32, %arg1: i32) -> (i32, i32) {
    %c0_i32 = arith.constant 0 : i32
    %c0_i32_0 = arith.constant 0 : i32
    return %c0_i32, %arg0 : i32, i32
  }
}

</mosaic_0001>

<llo_original>
// kernel: tpu_custom_call.1
$region0: #{tpu_custom_call.1}
  #allocation0 [shape = 'u32[]', space=smem, size = 0x4, offset = 0x4, fixed_abs, tag = 'smem constant byte address 0x4 - core index']
  #allocation1 [shape = 'u32[72,128]{1,0:T(1,128)}', space=vmem, size = 0x9000, scoped, tag = 'internal scratch']
  %s0 = inlined_call_operand.hbm [shape: bf16[8,1024], index: 0, kind: input, shape index: {}]
  %s1 = inlined_call_operand.hbm [shape: bf16[1024,128], index: 1, kind: input, shape index: {}]
  %s2 = inlined_call_operand.vmem [shape: f32[1,128], index: 2, kind: input, shape index: {}]
  %s3 = inlined_call_operand.hbm [shape: f32[8,128], index: 3, kind: output, shape index: {}]
  %s4 = sld [smem:[#allocation0]]
  $region34: #{tpu_custom_call.1} parent=0
    _
  %s6 = ssub.s32 1, %s4
  %s7 = scalar_select 0, %s6, %s4
  $region1: #{tpu_custom_call.1} parent=0
    #allocation2 [shape = 'u8[16384]{0}', space=vmem, size = 0x4000, scoped, tag = 'input window, operand 0, single buffered']
    #allocation3 [shape = 's32[1]{0}', space=sflag, size = 0x4, scoped, tag = 'scoped memory for tpu_custom_call.1']
    #allocation4 [shape = 's32[1]{0}', space=sflag, size = 0x4, scoped, tag = 'scoped memory for tpu_custom_call.1']
    #allocation5 [shape = 'u8[262144]{0}', space=vmem, size = 0x40000, scoped, tag = 'input window, operand 1, single buffered']
    #allocation6 [shape = 's32[1]{0}', space=sflag, size = 0x4, scoped, tag = 'scoped memory for tpu_custom_call.1']
    #allocation7 [shape = 'u8[4096]{0}', space=vmem, size = 0x1000, scoped, tag = 'output window, operand 0, single buffered']
    %8 = vsyncpa [#allocation3], 0
    %9 = vsyncpa [#allocation6], 0
    %10 = vsyncpa [#allocation4], 0
    // Predicated region
    $region2: #{tpu_custom_call.1} parent=1 // pred_check
      _
    $region3: #{tpu_custom_call.1} parent=1 // pred_check_branch
      %12 = sbr.rel (0) target = $region5
    $region4: #{tpu_custom_call.1} parent=1 // pred_region
      %14 = vsyncadd [#allocation3], 0
      %s16 = sshll.u32 %s0, 4
      %s17 = int_to_ptr.hbm [resolvable:$true] %s16
      %s18 = sshll.u32 [#allocation2], 4
      %s19 = int_to_ptr.vmem [resolvable:$true] %s18
      %21 = dma.hbm_to_vmem [thread:$0]  %s17, 512, %s19, [#allocation3]
    $region5: #{tpu_custom_call.1} parent=1 // pred_fallthru
      _
    // Predicated region
    $region6: #{tpu_custom_call.1} parent=1 // pred_check
      _
    $region7: #{tpu_custom_call.1} parent=1 // pred_check_branch
      %23 = sbr.rel (0) target = $region9
    $region8: #{tpu_custom_call.1} parent=1 // pred_region
      %25 = vsyncadd [#allocation6], 0
      %s26 = sshll.u32 %s1, 4
      %s27 = int_to_ptr.hbm [resolvable:$true] %s26
      %s28 = sshll.u32 [#allocation5], 4
      %s29 = int_to_ptr.vmem [resolvable:$true] %s28
      %34 = dma.hbm_to_vmem [thread:$0]  %s27, 8192, %s29, [#allocation6], 64, 64, 4
    $region9: #{tpu_custom_call.1} parent=1 // pred_fallthru
      _
    // Predicated region
    $region10: #{tpu_custom_call.1} parent=1 // pred_check
      _
    $region11: #{tpu_custom_call.1} parent=1 // pred_check_branch
      %36 = sbr.rel (0) target = $region13
    $region12: #{tpu_custom_call.1} parent=1 // pred_region
      _
    $region13: #{tpu_custom_call.1} parent=1 // pred_fallthru
      _
    // Predicated region
    $region14: #{tpu_custom_call.1} parent=1 // pred_check
      _
    $region15: #{tpu_custom_call.1} parent=1 // pred_check_branch
      %38 = sbr.rel (0) target = $region17
    $region16: #{tpu_custom_call.1} parent=1 // pred_region
      %40 = dma.done [#allocation3], 512
    $region17: #{tpu_custom_call.1} parent=1 // pred_fallthru
      _
    // Predicated region
    $region18: #{tpu_custom_call.1} parent=1 // pred_check
      _
    $region19: #{tpu_custom_call.1} parent=1 // pred_check_branch
      %42 = sbr.rel (0) target = $region21
    $region20: #{tpu_custom_call.1} parent=1 // pred_region
      %44 = dma.done [#allocation6], 8192
    $region21: #{tpu_custom_call.1} parent=1 // pred_fallthru
      _
    %p45 = scmp.eq.s32.totalorder 0, 0
    // Predicated region
    $region22: #{tpu_custom_call.1} parent=1 // pred_check
      %p46 = pneg %p45
    $region23: #{tpu_custom_call.1} parent=1 // pred_check_branch
      %48 = sbr.rel (%p46) target = $region25
    $region24: #{tpu_custom_call.1} parent=1 // pred_region
      %v49 = vld [vmem:[%s2] sm:$0x1]
      %v51 = vperm.slane %v49, 0
      %53 = vst [vmem:[#allocation7] sm:$0xff] %v51
    $region25: #{tpu_custom_call.1} parent=1 // pred_fallthru
      _
    %s54 = smul.u32 0, 1024
    %s55 = sshra.s32 %s54, 7
    %s56 = sand.u32 %s54, 127
    %s57 = smul.addr %s55, 4
    %s58 = scalar_lea.vmem [#allocation2], %s57
    %v59 = vld [vmem:[%s58] sm:$0xff]
    %v60 = vld [vmem:[%s58 + $0x8] sm:$0xff]
    %v61 = vld [vmem:[%s58 + $0x10] sm:$0xff]
    %v62 = vld [vmem:[%s58 + $0x18] sm:$0xff]
    %v63 = vld [vmem:[#allocation7] sm:$0xff]
    %v64 = vld [vmem:[#allocation5] sm:$0xf]
    %v65 = vld [vmem:[#allocation5 + $0x4] sm:$0xf]
    %v66 = vld [vmem:[#allocation5 + $0x8] sm:$0xf]
    %v67 = vld [vmem:[#allocation5 + $0xc] sm:$0xf]
    %v68 = vld [vmem:[#allocation5 + $0x10] sm:$0xf]
    %v69 = vld [vmem:[#allocation5 + $0x14] sm:$0xf]
    %v70 = vld [vmem:[#allocation5 + $0x18] sm:$0xf]
    %v71 = vld [vmem:[#allocation5 + $0x1c] sm:$0xf]
    %v72 = vld [vmem:[#allocation5 + $0x20] sm:$0xf]
    %v73 = vld [vmem:[#allocation5 + $0x24] sm:$0xf]
    %v74 = vld [vmem:[#allocation5 + $0x28] sm:$0xf]
    %v75 = vld [vmem:[#allocation5 + $0x2c] sm:$0xf]
    %v76 = vld [vmem:[#allocation5 + $0x30] sm:$0xf]
    %v77 = vld [vmem:[#allocation5 + $0x34] sm:$0xf]
    %v78 = vld [vmem:[#allocation5 + $0x38] sm:$0xf]
    %v79 = vld [vmem:[#allocation5 + $0x3c] sm:$0xf]
    %v80 = vld [vmem:[#allocation5 + $0x40] sm:$0xf]
    %v81 = vld [vmem:[#allocation5 + $0x44] sm:$0xf]
    %v82 = vld [vmem:[#allocation5 + $0x48] sm:$0xf]
    %v83 = vld [vmem:[#allocation5 + $0x4c] sm:$0xf]
    %v84 = vld [vmem:[#allocation5 + $0x50] sm:$0xf]
    %v85 = vld [vmem:[#allocation5 + $0x54] sm:$0xf]
    %v86 = vld [vmem:[#allocation5 + $0x58] sm:$0xf]
    %v87 = vld [vmem:[#allocation5 + $0x5c] sm:$0xf]
    %v88 = vld [vmem:[#allocation5 + $0x60] sm:$0xf]
    %v89 = vld [vmem:[#allocation5 + $0x64] sm:$0xf]
    %v90 = vld [vmem:[#allocation5 + $0x68] sm:$0xf]
    %v91 = vld [vmem:[#allocation5 + $0x6c] sm:$0xf]
    %v92 = vld [vmem:[#allocation5 + $0x70] sm:$0xf]
    %v93 = vld [vmem:[#allocation5 + $0x74] sm:$0xf]
    %v94 = vld [vmem:[#allocation5 + $0x78] sm:$0xf]
    %v95 = vld [vmem:[#allocation5 + $0x7c] sm:$0xf]
    %v96 = vld [vmem:[#allocation5 + $0x80] sm:$0xf]
    %v97 = vld [vmem:[#allocation5 + $0x84] sm:$0xf]
    %v98 = vld [vmem:[#allocation5 + $0x88] sm:$0xf]
    %v99 = vld [vmem:[#allocation5 + $0x8c] sm:$0xf]
    %v100 = vld [vmem:[#allocation5 + $0x90] sm:$0xf]
    %v101 = vld [vmem:[#allocation5 + $0x94] sm:$0xf]
    %v102 = vld [vmem:[#allocation5 + $0x98] sm:$0xf]
    %v103 = vld [vmem:[#allocation5 + $0x9c] sm:$0xf]
    %v104 = vld [vmem:[#allocation5 + $0xa0] sm:$0xf]
    %v105 = vld [vmem:[#allocation5 + $0xa4] sm:$0xf]
    %v106 = vld [vmem:[#allocation5 + $0xa8] sm:$0xf]
    %v107 = vld [vmem:[#allocation5 + $0xac] sm:$0xf]
    %v108 = vld [vmem:[#allocation5 + $0xb0] sm:$0xf]
    %v109 = vld [vmem:[#allocation5 + $0xb4] sm:$0xf]
    %v110 = vld [vmem:[#allocation5 + $0xb8] sm:$0xf]
    %v111 = vld [vmem:[#allocation5 + $0xbc] sm:$0xf]
    %v112 = vld [vmem:[#allocation5 + $0xc0] sm:$0xf]
    %v113 = vld [vmem:[#allocation5 + $0xc4] sm:$0xf]
    %v114 = vld [vmem:[#allocation5 + $0xc8] sm:$0xf]
    %v115 = vld [vmem:[#allocation5 + $0xcc] sm:$0xf]
    %v116 = vld [vmem:[#allocation5 + $0xd0] sm:$0xf]
    %v117 = vld [vmem:[#allocation5 + $0xd4] sm:$0xf]
    %v118 = vld [vmem:[#allocation5 + $0xd8] sm:$0xf]
    %v119 = vld [vmem:[#allocation5 + $0xdc] sm:$0xf]
    %v120 = vld [vmem:[#allocation5 + $0xe0] sm:$0xf]
    %v121 = vld [vmem:[#allocation5 + $0xe4] sm:$0xf]
    %v122 = vld [vmem:[#allocation5 + $0xe8] sm:$0xf]
    %v123 = vld [vmem:[#allocation5 + $0xec] sm:$0xf]
    %v124 = vld [vmem:[#allocation5 + $0xf0] sm:$0xf]
    %v125 = vld [vmem:[#allocation5 + $0xf4] sm:$0xf]
    %v126 = vld [vmem:[#allocation5 + $0xf8] sm:$0xf]
    %v127 = vld [vmem:[#allocation5 + $0xfc] sm:$0xf]
    %v128 = vld [vmem:[#allocation5 + $0x100] sm:$0xf]
    %v129 = vld [vmem:[#allocation5 + $0x104] sm:$0xf]
    %v130 = vld [vmem:[#allocation5 + $0x108] sm:$0xf]
    %v131 = vld [vmem:[#allocation5 + $0x10c] sm:$0xf]
    %v132 = vld [vmem:[#allocation5 + $0x110] sm:$0xf]
    %v133 = vld [vmem:[#allocation5 + $0x114] sm:$0xf]
    %v134 = vld [vmem:[#allocation5 + $0x118] sm:$0xf]
    %v135 = vld [vmem:[#allocation5 + $0x11c] sm:$0xf]
    %v136 = vld [vmem:[#allocation5 + $0x120] sm:$0xf]
    %v137 = vld [vmem:[#allocation5 + $0x124] sm:$0xf]
    %v138 = vld [vmem:[#allocation5 + $0x128] sm:$0xf]
    %v139 = vld [vmem:[#allocation5 + $0x12c] sm:$0xf]
    %v140 = vld [vmem:[#allocation5 + $0x130] sm:$0xf]
    %v141 = vld [vmem:[#allocation5 + $0x134] sm:$0xf]
    %v142 = vld [vmem:[#allocation5 + $0x138] sm:$0xf]
    %v143 = vld [vmem:[#allocation5 + $0x13c] sm:$0xf]
    %v144 = vld [vmem:[#allocation5 + $0x140] sm:$0xf]
    %v145 = vld [vmem:[#allocation5 + $0x144] sm:$0xf]
    %v146 = vld [vmem:[#allocation5 + $0x148] sm:$0xf]
    %v147 = vld [vmem:[#allocation5 + $0x14c] sm:$0xf]
    %v148 = vld [vmem:[#allocation5 + $0x150] sm:$0xf]
    %v149 = vld [vmem:[#allocation5 + $0x154] sm:$0xf]
    %v150 = vld [vmem:[#allocation5 + $0x158] sm:$0xf]
    %v151 = vld [vmem:[#allocation5 + $0x15c] sm:$0xf]
    %v152 = vld [vmem:[#allocation5 + $0x160] sm:$0xf]
    %v153 = vld [vmem:[#allocation5 + $0x164] sm:$0xf]
    %v154 = vld [vmem:[#allocation5 + $0x168] sm:$0xf]
    %v155 = vld [vmem:[#allocation5 + $0x16c] sm:$0xf]
    %v156 = vld [vmem:[#allocation5 + $0x170] sm:$0xf]
    %v157 = vld [vmem:[#allocation5 + $0x174] sm:$0xf]
    %v158 = vld [vmem:[#allocation5 + $0x178] sm:$0xf]
    %v159 = vld [vmem:[#allocation5 + $0x17c] sm:$0xf]
    %v160 = vld [vmem:[#allocation5 + $0x180] sm:$0xf]
    %v161 = vld [vmem:[#allocation5 + $0x184] sm:$0xf]
    %v162 = vld [vmem:[#allocation5 + $0x188] sm:$0xf]
    %v163 = vld [vmem:[#allocation5 + $0x18c] sm:$0xf]
    %v164 = vld [vmem:[#allocation5 + $0x190] sm:$0xf]
    %v165 = vld [vmem:[#allocation5 + $0x194] sm:$0xf]
    %v166 = vld [vmem:[#allocation5 + $0x198] sm:$0xf]
    %v167 = vld [vmem:[#allocation5 + $0x19c] sm:$0xf]
    %v168 = vld [vmem:[#allocation5 + $0x1a0] sm:$0xf]
    %v169 = vld [vmem:[#allocation5 + $0x1a4] sm:$0xf]
    %v170 = vld [vmem:[#allocation5 + $0x1a8] sm:$0xf]
    %v171 = vld [vmem:[#allocation5 + $0x1ac] sm:$0xf]
    %v172 = vld [vmem:[#allocation5 + $0x1b0] sm:$0xf]
    %v173 = vld [vmem:[#allocation5 + $0x1b4] sm:$0xf]
    %v174 = vld [vmem:[#allocation5 + $0x1b8] sm:$0xf]
    %v175 = vld [vmem:[#allocation5 + $0x1bc] sm:$0xf]
    %v176 = vld [vmem:[#allocation5 + $0x1c0] sm:$0xf]
    %v177 = vld [vmem:[#allocation5 + $0x1c4] sm:$0xf]
    %v178 = vld [vmem:[#allocation5 + $0x1c8] sm:$0xf]
    %v179 = vld [vmem:[#allocation5 + $0x1cc] sm:$0xf]
    %v180 = vld [vmem:[#allocation5 + $0x1d0] sm:$0xf]
    %v181 = vld [vmem:[#allocation5 + $0x1d4] sm:$0xf]
    %v182 = vld [vmem:[#allocation5 + $0x1d8] sm:$0xf]
    %v183 = vld [vmem:[#allocation5 + $0x1dc] sm:$0xf]
    %v184 = vld [vmem:[#allocation5 + $0x1e0] sm:$0xf]
    %v185 = vld [vmem:[#allocation5 + $0x1e4] sm:$0xf]
    %v186 = vld [vmem:[#allocation5 + $0x1e8] sm:$0xf]
    %v187 = vld [vmem:[#allocation5 + $0x1ec] sm:$0xf]
    %v188 = vld [vmem:[#allocation5 + $0x1f0] sm:$0xf]
    %v189 = vld [vmem:[#allocation5 + $0x1f4] sm:$0xf]
    %v190 = vld [vmem:[#allocation5 + $0x1f8] sm:$0xf]
    %v191 = vld [vmem:[#allocation5 + $0x1fc] sm:$0xf]
    %v196 = vunpack.c.l.b16 %v59
    %v197 = vunpack.c.h.b16 %v59
    %v198 = vunpack.c.l.b16 %v60
    %v199 = vunpack.c.h.b16 %v60
    %v200 = vunpack.c.l.b16 %v61
    %v201 = vunpack.c.h.b16 %v61
    %v202 = vunpack.c.l.b16 %v62
    %v203 = vunpack.c.h.b16 %v62
    %v204 = vpack.c.b16 %v196, %v196
    %v205 = vpack.c.b16 %v197, %v197
    %v206 = vpack.c.b16 %v198, %v198
    %v207 = vpack.c.b16 %v199, %v199
    %v208 = vpack.c.b16 %v200, %v200
    %v209 = vpack.c.b16 %v201, %v201
    %v210 = vpack.c.b16 %v202, %v202
    %v211 = vpack.c.b16 %v203, %v203
    %v348 = vunpack.c.l.b16 %v64
    %v349 = vunpack.c.l.b16 %v65
    %v350 = vunpack.c.l.b16 %v66
    %v351 = vunpack.c.l.b16 %v67
    %v352 = vunpack.c.l.b16 %v68
    %v353 = vunpack.c.l.b16 %v69
    %v354 = vunpack.c.l.b16 %v70
    %v355 = vunpack.c.l.b16 %v71
    %v356 = vunpack.c.l.b16 %v72
    %v357 = vunpack.c.l.b16 %v73
    %v358 = vunpack.c.l.b16 %v74
    %v359 = vunpack.c.l.b16 %v75
    %v360 = vunpack.c.l.b16 %v76
    %v361 = vunpack.c.l.b16 %v77
    %v362 = vunpack.c.l.b16 %v78
    %v363 = vunpack.c.l.b16 %v79
    %v364 = vunpack.c.l.b16 %v80
    %v365 = vunpack.c.l.b16 %v81
    %v366 = vunpack.c.l.b16 %v82
    %v367 = vunpack.c.l.b16 %v83
    %v368 = vunpack.c.l.b16 %v84
    %v369 = vunpack.c.l.b16 %v85
    %v370 = vunpack.c.l.b16 %v86
    %v371 = vunpack.c.l.b16 %v87
    %v372 = vunpack.c.l.b16 %v88
    %v373 = vunpack.c.l.b16 %v89
    %v374 = vunpack.c.l.b16 %v90
    %v375 = vunpack.c.l.b16 %v91
    %v376 = vunpack.c.l.b16 %v92
    %v377 = vunpack.c.l.b16 %v93
    %v378 = vunpack.c.l.b16 %v94
    %v379 = vunpack.c.l.b16 %v95
    %v380 = vunpack.c.l.b16 %v96
    %v381 = vunpack.c.l.b16 %v97
    %v382 = vunpack.c.l.b16 %v98
    %v383 = vunpack.c.l.b16 %v99
    %v384 = vunpack.c.l.b16 %v100
    %v385 = vunpack.c.l.b16 %v101
    %v386 = vunpack.c.l.b16 %v102
    %v387 = vunpack.c.l.b16 %v103
    %v388 = vunpack.c.l.b16 %v104
    %v389 = vunpack.c.l.b16 %v105
    %v390 = vunpack.c.l.b16 %v106
    %v391 = vunpack.c.l.b16 %v107
    %v392 = vunpack.c.l.b16 %v108
    %v393 = vunpack.c.l.b16 %v109
    %v394 = vunpack.c.l.b16 %v110
    %v395 = vunpack.c.l.b16 %v111
    %v396 = vunpack.c.l.b16 %v112
    %v397 = vunpack.c.l.b16 %v113
    %v398 = vunpack.c.l.b16 %v114
    %v399 = vunpack.c.l.b16 %v115
    %v400 = vunpack.c.l.b16 %v116
    %v401 = vunpack.c.l.b16 %v117
    %v402 = vunpack.c.l.b16 %v118
    %v403 = vunpack.c.l.b16 %v119
    %v404 = vunpack.c.l.b16 %v120
    %v405 = vunpack.c.l.b16 %v121
    %v406 = vunpack.c.l.b16 %v122
    %v407 = vunpack.c.l.b16 %v123
    %v408 = vunpack.c.l.b16 %v124
    %v409 = vunpack.c.l.b16 %v125
    %v410 = vunpack.c.l.b16 %v126
    %v411 = vunpack.c.l.b16 %v127
    %v412 = vunpack.c.l.b16 %v128
    %v413 = vunpack.c.l.b16 %v129
    %v414 = vunpack.c.l.b16 %v130
    %v415 = vunpack.c.l.b16 %v131
    %v416 = vunpack.c.l.b16 %v132
    %v417 = vunpack.c.l.b16 %v133
    %v418 = vunpack.c.l.b16 %v134
    %v419 = vunpack.c.l.b16 %v135
    %v420 = vunpack.c.l.b16 %v136
    %v421 = vunpack.c.l.b16 %v137
    %v422 = vunpack.c.l.b16 %v138
    %v423 = vunpack.c.l.b16 %v139
    %v424 = vunpack.c.l.b16 %v140
    %v425 = vunpack.c.l.b16 %v141
    %v426 = vunpack.c.l.b16 %v142
    %v427 = vunpack.c.l.b16 %v143
    %v428 = vunpack.c.l.b16 %v144
    %v429 = vunpack.c.l.b16 %v145
    %v430 = vunpack.c.l.b16 %v146
    %v431 = vunpack.c.l.b16 %v147
    %v432 = vunpack.c.l.b16 %v148
    %v433 = vunpack.c.l.b16 %v149
    %v434 = vunpack.c.l.b16 %v150
    %v435 = vunpack.c.l.b16 %v151
    %v436 = vunpack.c.l.b16 %v152
    %v437 = vunpack.c.l.b16 %v153
    %v438 = vunpack.c.l.b16 %v154
    %v439 = vunpack.c.l.b16 %v155
    %v440 = vunpack.c.l.b16 %v156
    %v441 = vunpack.c.l.b16 %v157
    %v442 = vunpack.c.l.b16 %v158
    %v443 = vunpack.c.l.b16 %v159
    %v444 = vunpack.c.l.b16 %v160
    %v445 = vunpack.c.l.b16 %v161
    %v446 = vunpack.c.l.b16 %v162
    %v447 = vunpack.c.l.b16 %v163
    %v448 = vunpack.c.l.b16 %v164
    %v449 = vunpack.c.l.b16 %v165
    %v450 = vunpack.c.l.b16 %v166
    %v451 = vunpack.c.l.b16 %v167
    %v452 = vunpack.c.l.b16 %v168
    %v453 = vunpack.c.l.b16 %v169
    %v454 = vunpack.c.l.b16 %v170
    %v455 = vunpack.c.l.b16 %v171
    %v456 = vunpack.c.l.b16 %v172
    %v457 = vunpack.c.l.b16 %v173
    %v458 = vunpack.c.l.b16 %v174
    %v459 = vunpack.c.l.b16 %v175
    %v460 = vunpack.c.l.b16 %v176
    %v461 = vunpack.c.l.b16 %v177
    %v462 = vunpack.c.l.b16 %v178
    %v463 = vunpack.c.l.b16 %v179
    %v464 = vunpack.c.l.b16 %v180
    %v465 = vunpack.c.l.b16 %v181
    %v466 = vunpack.c.l.b16 %v182
    %v467 = vunpack.c.l.b16 %v183
    %v468 = vunpack.c.l.b16 %v184
    %v469 = vunpack.c.l.b16 %v185
    %v470 = vunpack.c.l.b16 %v186
    %v471 = vunpack.c.l.b16 %v187
    %v472 = vunpack.c.l.b16 %v188
    %v473 = vunpack.c.l.b16 %v189
    %v474 = vunpack.c.l.b16 %v190
    %v475 = vunpack.c.l.b16 %v191
    %v476 = vpack.c.b16 %v349, %v348
    %v477 = vpack.c.b16 %v351, %v350
    %v478 = vpack.c.b16 %v353, %v352
    %v479 = vpack.c.b16 %v355, %v354
    %v480 = vpack.c.b16 %v357, %v356
    %v481 = vpack.c.b16 %v359, %v358
    %v482 = vpack.c.b16 %v361, %v360
    %v483 = vpack.c.b16 %v363, %v362
    %v484 = vpack.c.b16 %v365, %v364
    %v485 = vpack.c.b16 %v367, %v366
    %v486 = vpack.c.b16 %v369, %v368
    %v487 = vpack.c.b16 %v371, %v370
    %v488 = vpack.c.b16 %v373, %v372
    %v489 = vpack.c.b16 %v375, %v374
    %v490 = vpack.c.b16 %v377, %v376
    %v491 = vpack.c.b16 %v379, %v378
    %v492 = vpack.c.b16 %v381, %v380
    %v493 = vpack.c.b16 %v383, %v382
    %v494 = vpack.c.b16 %v385, %v384
    %v495 = vpack.c.b16 %v387, %v386
    %v496 = vpack.c.b16 %v389, %v388
    %v497 = vpack.c.b16 %v391, %v390
    %v498 = vpack.c.b16 %v393, %v392
    %v499 = vpack.c.b16 %v395, %v394
    %v500 = vpack.c.b16 %v397, %v396
    %v501 = vpack.c.b16 %v399, %v398
    %v502 = vpack.c.b16 %v401, %v400
    %v503 = vpack.c.b16 %v403, %v402
    %v504 = vpack.c.b16 %v405, %v404
    %v505 = vpack.c.b16 %v407, %v406
    %v506 = vpack.c.b16 %v409, %v408
    %v507 = vpack.c.b16 %v411, %v410
    %v508 = vpack.c.b16 %v413, %v412
    %v509 = vpack.c.b16 %v415, %v414
    %v510 = vpack.c.b16 %v417, %v416
    %v511 = vpack.c.b16 %v419, %v418
    %v512 = vpack.c.b16 %v421, %v420
    %v513 = vpack.c.b16 %v423, %v422
    %v514 = vpack.c.b16 %v425, %v424
    %v515 = vpack.c.b16 %v427, %v426
    %v516 = vpack.c.b16 %v429, %v428
    %v517 = vpack.c.b16 %v431, %v430
    %v518 = vpack.c.b16 %v433, %v432
    %v519 = vpack.c.b16 %v435, %v434
    %v520 = vpack.c.b16 %v437, %v436
    %v521 = vpack.c.b16 %v439, %v438
    %v522 = vpack.c.b16 %v441, %v440
    %v523 = vpack.c.b16 %v443, %v442
    %v524 = vpack.c.b16 %v445, %v444
    %v525 = vpack.c.b16 %v447, %v446
    %v526 = vpack.c.b16 %v449, %v448
    %v527 = vpack.c.b16 %v451, %v450
    %v528 = vpack.c.b16 %v453, %v452
    %v529 = vpack.c.b16 %v455, %v454
    %v530 = vpack.c.b16 %v457, %v456
    %v531 = vpack.c.b16 %v459, %v458
    %v532 = vpack.c.b16 %v461, %v460
    %v533 = vpack.c.b16 %v463, %v462
    %v534 = vpack.c.b16 %v465, %v464
    %v535 = vpack.c.b16 %v467, %v466
    %v536 = vpack.c.b16 %v469, %v468
    %v537 = vpack.c.b16 %v471, %v470
    %v538 = vpack.c.b16 %v473, %v472
    %v539 = vpack.c.b16 %v475, %v474
    %604 = vmatpush.bf16.msra.mxu0 %v483
    %605 = vmatpush.bf16.msra.mxu0 %v482
    %606 = vmatpush.bf16.msra.mxu0 %v481
    %607 = vmatpush.bf16.msra.mxu0 %v480
    %608 = vmatpush.bf16.msra.mxu0 %v479
    %609 = vmatpush.bf16.msra.mxu0 %v478
    %610 = vmatpush.bf16.msra.mxu0 %v477
    %611 = vmatpush.bf16.msra.mxu0 %v476
    %612 = vmatmul.bf16.gmra.mxu0 %v204
    %v613 = vpop.f32.mrf.mxu0
    %v614 = vadd.f32 0.0, %v613
    %v615 = vpop.f32.mrf.mxu0
    %616 = vdwg.mxu0
    %617 = vmatpush.bf16.msra.mxu0 %v491
    %618 = vmatpush.bf16.msra.mxu0 %v490
    %619 = vmatpush.bf16.msra.mxu0 %v489
    %620 = vmatpush.bf16.msra.mxu0 %v488
    %621 = vmatpush.bf16.msra.mxu0 %v487
    %622 = vmatpush.bf16.msra.mxu0 %v486
    %623 = vmatpush.bf16.msra.mxu0 %v485
    %624 = vmatpush.bf16.msra.mxu0 %v484
    %625 = vmatmul.bf16.gmra.mxu0 %v205
    %v626 = vpop.f32.mrf.mxu0
    %v627 = vadd.f32 %v614, %v626
    %v628 = vpop.f32.mrf.mxu0
    %629 = vdwg.mxu0
    %630 = vmatpush.bf16.msra.mxu0 %v499
    %631 = vmatpush.bf16.msra.mxu0 %v498
    %632 = vmatpush.bf16.msra.mxu0 %v497
    %633 = vmatpush.bf16.msra.mxu0 %v496
    %634 = vmatpush.bf16.msra.mxu0 %v495
    %635 = vmatpush.bf16.msra.mxu0 %v494
    %636 = vmatpush.bf16.msra.mxu0 %v493
    %637 = vmatpush.bf16.msra.mxu0 %v492
    %638 = vmatmul.bf16.gmra.mxu0 %v206
    %v639 = vpop.f32.mrf.mxu0
    %v640 = vadd.f32 %v627, %v639
    %v641 = vpop.f32.mrf.mxu0
    %642 = vdwg.mxu0
    %643 = vmatpush.bf16.msra.mxu0 %v507
    %644 = vmatpush.bf16.msra.mxu0 %v506
    %645 = vmatpush.bf16.msra.mxu0 %v505
    %646 = vmatpush.bf16.msra.mxu0 %v504
    %647 = vmatpush.bf16.msra.mxu0 %v503
    %648 = vmatpush.bf16.msra.mxu0 %v502
    %649 = vmatpush.bf16.msra.mxu0 %v501
    %650 = vmatpush.bf16.msra.mxu0 %v500
    %651 = vmatmul.bf16.gmra.mxu0 %v207
    %v652 = vpop.f32.mrf.mxu0
    %v653 = vadd.f32 %v640, %v652
    %v654 = vpop.f32.mrf.mxu0
    %655 = vdwg.mxu0
    %656 = vmatpush.bf16.msra.mxu0 %v515
    %657 = vmatpush.bf16.msra.mxu0 %v514
    %658 = vmatpush.bf16.msra.mxu0 %v513
    %659 = vmatpush.bf16.msra.mxu0 %v512
    %660 = vmatpush.bf16.msra.mxu0 %v511
    %661 = vmatpush.bf16.msra.mxu0 %v510
    %662 = vmatpush.bf16.msra.mxu0 %v509
    %663 = vmatpush.bf16.msra.mxu0 %v508
    %664 = vmatmul.bf16.gmra.mxu0 %v208
    %v665 = vpop.f32.mrf.mxu0
    %v666 = vadd.f32 %v653, %v665
    %v667 = vpop.f32.mrf.mxu0
    %668 = vdwg.mxu0
    %669 = vmatpush.bf16.msra.mxu0 %v523
    %670 = vmatpush.bf16.msra.mxu0 %v522
    %671 = vmatpush.bf16.msra.mxu0 %v521
    %672 = vmatpush.bf16.msra.mxu0 %v520
    %673 = vmatpush.bf16.msra.mxu0 %v519
    %674 = vmatpush.bf16.msra.mxu0 %v518
    %675 = vmatpush.bf16.msra.mxu0 %v517
    %676 = vmatpush.bf16.msra.mxu0 %v516
    %677 = vmatmul.bf16.gmra.mxu0 %v209
    %v678 = vpop.f32.mrf.mxu0
    %v679 = vadd.f32 %v666, %v678
    %v680 = vpop.f32.mrf.mxu0
    %681 = vdwg.mxu0
    %682 = vmatpush.bf16.msra.mxu0 %v531
    %683 = vmatpush.bf16.msra.mxu0 %v530
    %684 = vmatpush.bf16.msra.mxu0 %v529
    %685 = vmatpush.bf16.msra.mxu0 %v528
    %686 = vmatpush.bf16.msra.mxu0 %v527
    %687 = vmatpush.bf16.msra.mxu0 %v526
    %688 = vmatpush.bf16.msra.mxu0 %v525
    %689 = vmatpush.bf16.msra.mxu0 %v524
    %690 = vmatmul.bf16.gmra.mxu0 %v210
    %v691 = vpop.f32.mrf.mxu0
    %v692 = vadd.f32 %v679, %v691
    %v693 = vpop.f32.mrf.mxu0
    %694 = vdwg.mxu0
    %695 = vmatpush.bf16.msra.mxu0 %v539
    %696 = vmatpush.bf16.msra.mxu0 %v538
    %697 = vmatpush.bf16.msra.mxu0 %v537
    %698 = vmatpush.bf16.msra.mxu0 %v536
    %699 = vmatpush.bf16.msra.mxu0 %v535
    %700 = vmatpush.bf16.msra.mxu0 %v534
    %701 = vmatpush.bf16.msra.mxu0 %v533
    %702 = vmatpush.bf16.msra.mxu0 %v532
    %703 = vmatmul.bf16.gmra.mxu0 %v211
    %v704 = vpop.f32.mrf.mxu0
    %v705 = vadd.f32 %v692, %v704
    %v706 = vpop.f32.mrf.mxu0
    %707 = vdwg.mxu0
    %v708 = vadd.f32 %v63, %v705
    %709 = vst [vmem:[#allocation7] sm:$0xff] %v708
    // Predicated region
    $region26: #{tpu_custom_call.1} parent=1 // pred_check
      _
    $region27: #{tpu_custom_call.1} parent=1 // pred_check_branch
      %711 = sbr.rel (0) target = $region29
    $region28: #{tpu_custom_call.1} parent=1 // pred_region
      %713 = vsyncadd [#allocation4], 0
      %s715 = sshll.u32 [#allocation7], 4
      %s716 = int_to_ptr.vmem [resolvable:$true] %s715
      %s717 = sshll.u32 %s3, 4
      %s718 = int_to_ptr.hbm [resolvable:$true] %s717
      %720 = dma.vmem_to_hbm [thread:$0]  %s716, 128, %s718, [#allocation4]
    $region29: #{tpu_custom_call.1} parent=1 // pred_fallthru
      _
    // Predicated region
    $region30: #{tpu_custom_call.1} parent=1 // pred_check
      _
    $region31: #{tpu_custom_call.1} parent=1 // pred_check_branch
      %722 = sbr.rel (0) target = $region33
    $region32: #{tpu_custom_call.1} parent=1 // pred_region
      %724 = dma.done [#allocation4], 128
    $region33: #{tpu_custom_call.1} parent=1 // pred_fallthru
      _
    %725 = vsyncpa [#allocation3], 1
    %726 = vsyncpa [#allocation6], 1
    %727 = vsyncpa [#allocation4], 1

</llo_original>
